<compile_context>
chip_gen: v5e
topology: v5e:2x2
jax: 0.10.0
libtpu: 0.0.40
codegen_flags: <defaults>
</compile_context>

<pallas_src>
import jax
import jax.numpy as jnp
from jax.experimental import pallas as pl
from jax.experimental.pallas import tpu as pltpu


def _pos_emb_kernel(x_ref, f_ref, o_ref):
    # x_ref: (tile_n, 1)   noise scales, sublane axis = positions
    # f_ref: (1, C)        [freqs | freqs], resident (same block every step)
    # o_ref: (tile_n, C)   final [cos | sin] tile, lane axis = channels
    x = x_ref[...].astype(jnp.float32)
    f = f_ref[...].astype(jnp.float32)
    # Rank-1 outer product: a VPU broadcast multiply (MXU would be wasted on
    # K=1); cos/sin go to the EUP which has its own bundle slot.
    phase = x * f                                        # (tile_n, C), float32
    half = f_ref.shape[1] // 2
    lane = jax.lax.broadcasted_iota(jnp.int32, phase.shape, dimension=1)
    out = jnp.where(lane < half, jnp.cos(phase), jnp.sin(phase))
    o_ref[...] = out.astype(o_ref.dtype)


def _round_up(v, m):
    return (v + m - 1) // m * m


def _tile_and_pad(n, num_channels, out_bytes):
    """Pick the N tile, padded N, and VMEM limit for the current chip."""
    # Sublane granule for the output dtype: f32 -> 8, bf16/f16 -> 16, 8-bit -> 32.
    granule = max(8, 32 // max(out_bytes, 1))
    n_g = _round_up(max(n, 1), granule)

    # Per-step VMEM budget (double-buffered output tile + f32 temporaries).
    # v5e/v6e have 128 MiB physical VMEM -> bigger tiles; v7x (64 MiB physical,
    # 32 MiB scoped) keeps the conservative budget.
    try:
        vmem_cap = pltpu.get_tpu_info().vmem_capacity_bytes
    except Exception:  # pragma: no cover - fall back to the safe v7x numbers
        vmem_cap = 64 * 1024 * 1024
    big_vmem = vmem_cap >= 100 * 1024 * 1024
    budget = (24 if big_vmem else 8) * 1024 * 1024
    vmem_limit = (64 if big_vmem else 32) * 1024 * 1024

    per_row = num_channels * (2 * out_bytes + 4 * 4)     # 2 out bufs + f32 temps
    t_max = max(granule, budget // max(per_row, 1))
    t_max = min((t_max // granule) * granule, 8192)

    if n_g <= t_max:
        tile_n = n_g
        # Megacore on v7x only engages with >=2 parallel grid steps.
        if n_g >= 256:
            tile_n = _round_up(pl.cdiv(n_g, 2), granule)
    else:
        tile_n = t_max
    n_pad = _round_up(n_g, tile_n)
    return tile_n, n_pad, vmem_limit


def positional_embedding(x, num_channels, max_positions=10000, endpoint=False):
    """Pallas TPU implementation of PositionalEmbedding.forward.

    x: (N,) array of noise scales.
    returns: (N, num_channels) array = [cos(x*freqs) | sin(x*freqs)].
    """
    assert x.ndim == 1, "expected a 1-D vector of noise scales"
    assert num_channels % 2 == 0, "num_channels must be even (cos | sin halves)"
    n = x.shape[0]
    half = num_channels // 2
    out_dtype = x.dtype
    out_bytes = jnp.dtype(out_dtype).itemsize

    # Parameter-free frequency setup (plain JAX glue; matches torch exactly,
    # including the .to(x.dtype) cast).  Duplicated so one resident row drives
    # both the cos and sin halves of the output tile.
    freqs = jnp.arange(half, dtype=jnp.float32)
    freqs = freqs / (half - (1 if endpoint else 0))
    freqs = (1.0 / max_positions) ** freqs
    freqs = freqs.astype(out_dtype)
    f_row = jnp.concatenate([freqs, freqs]).reshape(1, num_channels)

    tile_n, n_pad, vmem_limit = _tile_and_pad(n, num_channels, out_bytes)
    grid = (n_pad // tile_n,)

    # Positions on the sublane axis; pad only to the sublane granule (no-op
    # when N is already aligned).
    x_col = jnp.pad(x, (0, n_pad - n)).reshape(n_pad, 1)

    cost = pl.CostEstimate(
        flops=n_pad * num_channels,
        transcendentals=2 * n_pad * num_channels,
        bytes_accessed=(n_pad * num_channels + n_pad + num_channels) * out_bytes,
    )

    out_pad = pl.pallas_call(
        _pos_emb_kernel,
        out_shape=jax.ShapeDtypeStruct((n_pad, num_channels), out_dtype),
        grid_spec=pltpu.PrefetchScalarGridSpec(
            num_scalar_prefetch=0,
            grid=grid,
            in_specs=[
                pl.BlockSpec((tile_n, 1), lambda i: (i, 0)),          # x tile
                pl.BlockSpec((1, num_channels), lambda i: (0, 0)),    # freqs resident
            ],
            out_specs=pl.BlockSpec((tile_n, num_channels), lambda i: (i, 0)),
        ),
        compiler_params=pltpu.CompilerParams(
            dimension_semantics=("parallel",),        # megacore shard on v7x
            vmem_limit_bytes=vmem_limit,
        ),
        cost_estimate=cost,
    )(x_col, f_row)

    return out_pad[:n] if n_pad != n else out_pad


def _reference(x, num_channels, max_positions=10000, endpoint=False):
    half = num_channels // 2
    freqs = jnp.arange(half, dtype=jnp.float32)
    freqs = freqs / (half - (1 if endpoint else 0))
    freqs = (1.0 / max_positions) ** freqs
    phase = jnp.outer(x, freqs.astype(x.dtype))
    return jnp.concatenate([jnp.cos(phase), jnp.sin(phase)], axis=1)


if __name__ == "__main__":
    key = jax.random.PRNGKey(0)
    num_channels = 32          # -> 16 cos channels + 16 sin channels
    n = 8                      # batch of noise scales
    x = jax.random.uniform(key, (n,), dtype=jnp.float32) * 10.0

    out = positional_embedding(x, num_channels)
    out = jax.block_until_ready(out)

    ref = _reference(x, num_channels)
    assert out.shape == (n, num_channels)
    assert jnp.allclose(out, ref, atol=1e-5, rtol=1e-5)
    print("KERNEL_OK")
</pallas_src>

<mosaic_0001>
module attributes {stable_mosaic.version = 11 : i64} {
  func.func @_pos_emb_kernel(%arg0: i32, %arg1: memref<8x1xf32, #tpu.memory_space<vmem>>, %arg2: memref<1x32xf32, #tpu.memory_space<vmem>>, %arg3: memref<8x32xf32, #tpu.memory_space<vmem>>) attributes {dimension_semantics = [#tpu.dimension_semantics<parallel>], iteration_bounds = array<i64: 1>, scalar_prefetch = 0 : i64, scratch_operands = 0 : i64, tpu.core_type = #tpu.core_type<tc>, window_params = [{transform_indices = @transform_0, window_bounds = array<i64: 8, 1>}, {pipeline_mode = #tpu.pipeline_mode<synchronous>, transform_indices = @transform_1, window_bounds = array<i64: 1, 32>}, {transform_indices = @transform_2, window_bounds = array<i64: 8, 32>}]} {
    %c0 = arith.constant 0 : index
    %c0_0 = arith.constant 0 : index
    %0 = vector.load %arg1[%c0, %c0_0] : memref<8x1xf32, #tpu.memory_space<vmem>>, vector<8x1xf32>
    %c0_1 = arith.constant 0 : index
    %c0_2 = arith.constant 0 : index
    %1 = vector.load %arg2[%c0_1, %c0_2] : memref<1x32xf32, #tpu.memory_space<vmem>>, vector<1x32xf32>
    %2 = vector.broadcast %0 : vector<8x1xf32> to vector<8x32xf32>
    %3 = vector.broadcast %1 : vector<1x32xf32> to vector<8x32xf32>
    %4 = arith.mulf %2, %3 : vector<8x32xf32>
    %5 = tpu.iota {dimensions = array<i32: 1>} : vector<8x32xi32>
    %c16_i32 = arith.constant 16 : i32
    %6 = vector.broadcast %c16_i32 : i32 to vector<8x32xi32>
    %7 = arith.cmpi slt, %5, %6 : vector<8x32xi32>
    %8 = math.cos %4 : vector<8x32xf32>
    %9 = math.sin %4 : vector<8x32xf32>
    %10 = arith.select %7, %8, %9 : vector<8x32xi1>, vector<8x32xf32>
    %c0_3 = arith.constant 0 : index
    %c0_4 = arith.constant 0 : index
    %11 = vector.load %arg3[%c0_3, %c0_4] : memref<8x32xf32, #tpu.memory_space<vmem>>, vector<8x32xf32>
    tpu.vector_store %arg3[%c0_3, %c0_4], %10 {strides = array<i32>} : memref<8x32xf32, #tpu.memory_space<vmem>>, vector<8x32xf32>,
    return
  }
  func.func @transform_0(%arg0: i32) -> (i32, i32) {
    %c0_i32 = arith.constant 0 : i32
    %c0_i32_0 = arith.constant 0 : i32
    return %arg0, %c0_i32 : i32, i32
  }
  func.func @transform_1(%arg0: i32) -> (i32, i32) {
    %c0_i32 = arith.constant 0 : i32
    %c0_i32_0 = arith.constant 0 : i32
    %c0_i32_1 = arith.constant 0 : i32
    return %c0_i32, %c0_i32_0 : i32, i32
  }
  func.func @transform_2(%arg0: i32) -> (i32, i32) {
    %c0_i32 = arith.constant 0 : i32
    %c0_i32_0 = arith.constant 0 : i32
    return %arg0, %c0_i32 : i32, i32
  }
}

</mosaic_0001>

<llo_original>
// kernel: tpu_custom_call.1
$region0: #{tpu_custom_call.1}
  #allocation0 [shape = 'u32[]', space=smem, size = 0x4, offset = 0x4, fixed_abs, tag = 'smem constant byte address 0x4 - core index']
  #allocation1 [shape = 'u32[72,128]{1,0:T(1,128)}', space=vmem, size = 0x9000, scoped, tag = 'internal scratch']
  %s0 = inlined_call_operand.vmem [shape: f32[8,1], index: 0, kind: input, shape index: {}]
  %s1 = inlined_call_operand.vmem [shape: f32[1,32], index: 1, kind: input, shape index: {}]
  %s2 = inlined_call_operand.hbm [shape: f32[8,32], index: 2, kind: output, shape index: {}]
  %s3 = sld [smem:[#allocation0]]
  $region18: #{tpu_custom_call.1} parent=0
    _
  %s5 = ssub.s32 1, %s3
  %s6 = scalar_select 0, %s5, %s3
  $region1: #{tpu_custom_call.1} parent=0
    #allocation2 [shape = 'u8[4096]{0}', space=vmem, size = 0x1000, scoped, tag = 'output window, operand 0, single buffered']
    #allocation3 [shape = 's32[1]{0}', space=sflag, size = 0x4, scoped, tag = 'scoped memory for tpu_custom_call.1']
    %7 = vsyncpa [#allocation3], 0
    // Predicated region
    $region2: #{tpu_custom_call.1} parent=1 // pred_check
      _
    $region3: #{tpu_custom_call.1} parent=1 // pred_check_branch
      %9 = sbr.rel (0) target = $region5
    $region4: #{tpu_custom_call.1} parent=1 // pred_region
      _
    $region5: #{tpu_custom_call.1} parent=1 // pred_fallthru
      _
    // Predicated region
    $region6: #{tpu_custom_call.1} parent=1 // pred_check
      _
    $region7: #{tpu_custom_call.1} parent=1 // pred_check_branch
      %11 = sbr.rel (0) target = $region9
    $region8: #{tpu_custom_call.1} parent=1 // pred_region
      _
    $region9: #{tpu_custom_call.1} parent=1 // pred_fallthru
      _
    %v12 = vld [vmem:[%s0] sm:$0xff]
    %v13 = vld [vmem:[%s1] sm:$0x1]
    %15 = vset.pattern.permute.xlu0 0
    %16 = vperm.xlu0 %15, %v12
    %v17 = vpop.permute.xlu0 %16
    %v20 = vperm.slane %v13, 0
    %v22 = vmul.f32 %v17, %v20
    %v23 = vlaneseq
    %v24 = vand.u32 %v23, 127
    %vm25 = vcmp.lt.s32.totalorder %v24, 16
    %v26 = vand.u32 2147483647, %v22
    %vm27 = vcmp.le.f32.partialorder %v26, 0.7853982
    %vm28 = vcmp.lt.s32.totalorder %v22, 0
    %v29 = vand.u32 %v22, 2139095040
    %v30 = vshrl.u32 %v29, 23
    %v31 = vsub.s32 %v30, 127
    %v32 = vand.u32 2147483647, %v22
    %v33 = vand.u32 %v32, 8388607
    %v34 = vor.u32 %v33, 8388608
    %v35 = vsub.s32 0, %v34
    %v36 = vadd.s32 %v31, 1
    %vm37 = vcmp.gt.s32.totalorder %v36, 0
    %v38 = vsel %vm37, %v36, 0
    %v39 = vshrl.u32 %v38, 5
    %v40 = vand.u32 %v38, 31
    %v41 = vsub.s32 32, %v40
    %v42 = vshrl.u32 683565275, %v41
    %v43 = vshll.u32 683565275, %v40
    %v44 = vshrl.u32 2475754826, %v41
    %v45 = vor.u32 %v43, %v44
    %v46 = vshll.u32 2475754826, %v40
    %v47 = vshrl.u32 2131351028, %v41
    %v48 = vor.u32 %v46, %v47
    %v49 = vshll.u32 2131351028, %v40
    %v50 = vshrl.u32 2102212464, %v41
    %v51 = vor.u32 %v49, %v50
    %v52 = vshll.u32 2102212464, %v40
    %v53 = vshrl.u32 920167782, %v41
    %v54 = vor.u32 %v52, %v53
    %v55 = vshll.u32 920167782, %v40
    %v56 = vshrl.u32 1326507024, %v41
    %v57 = vor.u32 %v55, %v56
    %vm58 = vcmp.lt.s32.totalorder %v39, 1
    %vm59 = vcmp.lt.s32.totalorder %v39, 2
    %vm60 = vcmp.lt.s32.totalorder %v39, 3
    %vm61 = vcmp.lt.s32.totalorder %v39, 4
    %v62 = vsel %vm58, %v42, %v45
    %v63 = vsel %vm61, %v51, 2102212464
    %v64 = vsel %vm60, %v48, %v63
    %v65 = vsel %vm59, %v62, %v64
    %v66 = vsel %vm58, %v45, %v48
    %v67 = vsel %vm61, %v54, 920167782
    %v68 = vsel %vm60, %v51, %v67
    %v69 = vsel %vm59, %v66, %v68
    %v70 = vsel %vm58, %v48, %v51
    %v71 = vsel %vm61, %v57, 1326507024
    %v72 = vsel %vm60, %v54, %v71
    %v73 = vsel %vm59, %v70, %v72
    %v74 = vshll.u32 %v34, 8
    %v75 = vand.u32 %v74, 65535
    %v76 = vshrl.u32 %v74, 16
    %v77 = vand.u32 %v73, 65535
    %v78 = vshrl.u32 %v73, 16
    %v79 = vmul.u32 %v75, %v77
    %v80 = vmul.u32 %v75, %v78
    %v81 = vmul.u32 %v76, %v77
    %v82 = vmul.u32 %v76, %v78
    %v83 = vshll.u32 %v80, 16
    %v84 = vshrl.u32 %v80, 16
    %v85 = vshll.u32 %v81, 16
    %v86 = vshrl.u32 %v81, 16
    %vm87 = vc.u32 %v79, %v83
    %v88 = vsel %vm87, 1, 0
    %v89 = vadd.s32 %v79, %v83
    %v90 = vadd.s32 %v82, %v88
    %vm91 = vc.u32 %v89, %v85
    %v92 = vsel %vm91, 1, 0
    %v93 = vadd.s32 %v89, %v85
    %v94 = vadd.s32 %v90, %v92
    %v95 = vadd.s32 %v94, %v84
    %v96 = vadd.s32 %v95, %v86
    %v97 = vand.u32 %v74, 65535
    %v98 = vshrl.u32 %v74, 16
    %v99 = vand.u32 %v69, 65535
    %v100 = vshrl.u32 %v69, 16
    %v101 = vmul.u32 %v97, %v99
    %v102 = vmul.u32 %v97, %v100
    %v103 = vmul.u32 %v98, %v99
    %v104 = vmul.u32 %v98, %v100
    %v105 = vshll.u32 %v102, 16
    %v106 = vshrl.u32 %v102, 16
    %v107 = vshll.u32 %v103, 16
    %v108 = vshrl.u32 %v103, 16
    %vm109 = vc.u32 %v101, %v105
    %v110 = vsel %vm109, 1, 0
    %v111 = vadd.s32 %v101, %v105
    %v112 = vadd.s32 %v104, %v110
    %vm113 = vc.u32 %v111, %v107
    %v114 = vsel %vm113, 1, 0
    %v115 = vadd.s32 %v111, %v107
    %v116 = vadd.s32 %v112, %v114
    %v117 = vadd.s32 %v116, %v106
    %v118 = vadd.s32 %v117, %v108
    %v119 = vmul.u32 %v74, %v65
    %v120 = vadd.s32 %v96, %v115
    %vm121 = vc.u32 %v96, %v115
    %v122 = vadd.s32 %v118, 1
    %v123 = vsel %vm121, %v122, %v118
    %v124 = vadd.s32 %v119, %v123
    %v125 = vadd.s32 %v124, 536870912
    %v126 = vshrl.u32 %v125, 30
    %v127 = vshll.u32 %v126, 30
    %v128 = vsub.s32 %v124, %v127
    %vm129 = vcmp.lt.s32.totalorder %v128, 0
    %v130 = vsub.s32 0, %v128
    %v131 = vsel %vm129, %v130, %v128
    %v132 = vclz %v131
    %v133 = vsub.s32 %v132, 2
    %vm134 = vcmp.gt.s32.totalorder 0, %v133
    %v135 = vsel %vm134, 0, %v133
    %v136 = vsub.s32 32, %v135
    %v137 = vshll.u32 %v128, %v135
    %v138 = vshrl.u32 %v120, %v136
    %v139 = vor.u32 %v137, %v138
    %v140 = vsub.s32 4294967266, %v135
    %v141 = vadd.s32 %v140, 127
    %v142 = vshll.u32 %v141, 23
    %v143 = vor.u32 4788187, %v142
    %v144 = vand.u32 2147483647, %v143
    %v146 = vcvt.s32.f32 %v139
    %v147 = vmul.f32 %v146, %v144
    %v148 = vxor.u32 %v147, 2147483648
    %v149 = vsel %vm28, %v148, %v147
    %v150 = vsub.s32 4, %v126
    %v151 = vsel %vm28, %v150, %v126
    %v152 = vsel %vm27, %v22, %v149
    %v153 = vsel %vm27, 0, %v151
    %v154 = vmul.f32 %v152, %v152
    %v155 = vmul.f32 %v154, -0.001358992
    %v156 = vadd.f32 %v155, 0.041655596
    %v157 = vmul.f32 %v154, %v156
    %v158 = vadd.f32 %v157, -0.4999988
    %v159 = vmul.f32 %v154, %v158
    %v160 = vadd.f32 1.0, %v159
    %v161 = vmul.f32 %v152, %v152
    %v162 = vmul.f32 %v161, -0.00019511016
    %v163 = vadd.f32 %v162, 0.008332121
    %v164 = vmul.f32 %v161, %v163
    %v165 = vadd.f32 %v164, -0.16666654
    %v166 = vmul.f32 %v161, %v165
    %v167 = vadd.f32 %v166, 1.0
    %v168 = vmul.f32 %v167, %v152
    %vm169 = vweird.f32 %v22
    %v170 = vand.u32 %v153, 3
    %vm171 = vcmp.lt.s32.totalorder %v170, 2
    %vm172 = vcmp.eq.s32.totalorder %v170, 0
    %v173 = vxor.u32 %v168, 2147483648
    %v174 = vsel %vm172, %v160, %v173
    %vm175 = vcmp.eq.s32.totalorder %v170, 2
    %v176 = vxor.u32 %v160, 2147483648
    %v177 = vsel %vm175, %v176, %v168
    %v178 = vsel %vm171, %v174, %v177
    %v179 = vsel %vm169, nan, %v178
    %v180 = vand.u32 2147483647, %v22
    %vm181 = vcmp.le.f32.partialorder %v180, 0.7853982
    %vm182 = vcmp.lt.s32.totalorder %v22, 0
    %v183 = vand.u32 %v22, 2139095040
    %v184 = vshrl.u32 %v183, 23
    %v185 = vsub.s32 %v184, 127
    %v186 = vand.u32 2147483647, %v22
    %v187 = vand.u32 %v186, 8388607
    %v188 = vor.u32 %v187, 8388608
    %v189 = vsub.s32 0, %v188
    %v190 = vadd.s32 %v185, 1
    %vm191 = vcmp.gt.s32.totalorder %v190, 0
    %v192 = vsel %vm191, %v190, 0
    %v193 = vshrl.u32 %v192, 5
    %v194 = vand.u32 %v192, 31
    %v195 = vsub.s32 32, %v194
    %v196 = vshrl.u32 683565275, %v195
    %v197 = vshll.u32 683565275, %v194
    %v198 = vshrl.u32 2475754826, %v195
    %v199 = vor.u32 %v197, %v198
    %v200 = vshll.u32 2475754826, %v194
    %v201 = vshrl.u32 2131351028, %v195
    %v202 = vor.u32 %v200, %v201
    %v203 = vshll.u32 2131351028, %v194
    %v204 = vshrl.u32 2102212464, %v195
    %v205 = vor.u32 %v203, %v204
    %v206 = vshll.u32 2102212464, %v194
    %v207 = vshrl.u32 920167782, %v195
    %v208 = vor.u32 %v206, %v207
    %v209 = vshll.u32 920167782, %v194
    %v210 = vshrl.u32 1326507024, %v195
    %v211 = vor.u32 %v209, %v210
    %vm212 = vcmp.lt.s32.totalorder %v193, 1
    %vm213 = vcmp.lt.s32.totalorder %v193, 2
    %vm214 = vcmp.lt.s32.totalorder %v193, 3
    %vm215 = vcmp.lt.s32.totalorder %v193, 4
    %v216 = vsel %vm212, %v196, %v199
    %v217 = vsel %vm215, %v205, 2102212464
    %v218 = vsel %vm214, %v202, %v217
    %v219 = vsel %vm213, %v216, %v218
    %v220 = vsel %vm212, %v199, %v202
    %v221 = vsel %vm215, %v208, 920167782
    %v222 = vsel %vm214, %v205, %v221
    %v223 = vsel %vm213, %v220, %v222
    %v224 = vsel %vm212, %v202, %v205
    %v225 = vsel %vm215, %v211, 1326507024
    %v226 = vsel %vm214, %v208, %v225
    %v227 = vsel %vm213, %v224, %v226
    %v228 = vshll.u32 %v188, 8
    %v229 = vand.u32 %v228, 65535
    %v230 = vshrl.u32 %v228, 16
    %v231 = vand.u32 %v227, 65535
    %v232 = vshrl.u32 %v227, 16
    %v233 = vmul.u32 %v229, %v231
    %v234 = vmul.u32 %v229, %v232
    %v235 = vmul.u32 %v230, %v231
    %v236 = vmul.u32 %v230, %v232
    %v237 = vshll.u32 %v234, 16
    %v238 = vshrl.u32 %v234, 16
    %v239 = vshll.u32 %v235, 16
    %v240 = vshrl.u32 %v235, 16
    %vm241 = vc.u32 %v233, %v237
    %v242 = vsel %vm241, 1, 0
    %v243 = vadd.s32 %v233, %v237
    %v244 = vadd.s32 %v236, %v242
    %vm245 = vc.u32 %v243, %v239
    %v246 = vsel %vm245, 1, 0
    %v247 = vadd.s32 %v243, %v239
    %v248 = vadd.s32 %v244, %v246
    %v249 = vadd.s32 %v248, %v238
    %v250 = vadd.s32 %v249, %v240
    %v251 = vand.u32 %v228, 65535
    %v252 = vshrl.u32 %v228, 16
    %v253 = vand.u32 %v223, 65535
    %v254 = vshrl.u32 %v223, 16
    %v255 = vmul.u32 %v251, %v253
    %v256 = vmul.u32 %v251, %v254
    %v257 = vmul.u32 %v252, %v253
    %v258 = vmul.u32 %v252, %v254
    %v259 = vshll.u32 %v256, 16
    %v260 = vshrl.u32 %v256, 16
    %v261 = vshll.u32 %v257, 16
    %v262 = vshrl.u32 %v257, 16
    %vm263 = vc.u32 %v255, %v259
    %v264 = vsel %vm263, 1, 0
    %v265 = vadd.s32 %v255, %v259
    %v266 = vadd.s32 %v258, %v264
    %vm267 = vc.u32 %v265, %v261
    %v268 = vsel %vm267, 1, 0
    %v269 = vadd.s32 %v265, %v261
    %v270 = vadd.s32 %v266, %v268
    %v271 = vadd.s32 %v270, %v260
    %v272 = vadd.s32 %v271, %v262
    %v273 = vmul.u32 %v228, %v219
    %v274 = vadd.s32 %v250, %v269
    %vm275 = vc.u32 %v250, %v269
    %v276 = vadd.s32 %v272, 1
    %v277 = vsel %vm275, %v276, %v272
    %v278 = vadd.s32 %v273, %v277
    %v279 = vadd.s32 %v278, 536870912
    %v280 = vshrl.u32 %v279, 30
    %v281 = vshll.u32 %v280, 30
    %v282 = vsub.s32 %v278, %v281
    %vm283 = vcmp.lt.s32.totalorder %v282, 0
    %v284 = vsub.s32 0, %v282
    %v285 = vsel %vm283, %v284, %v282
    %v286 = vclz %v285
    %v287 = vsub.s32 %v286, 2
    %vm288 = vcmp.gt.s32.totalorder 0, %v287
    %v289 = vsel %vm288, 0, %v287
    %v290 = vsub.s32 32, %v289
    %v291 = vshll.u32 %v282, %v289
    %v292 = vshrl.u32 %v274, %v290
    %v293 = vor.u32 %v291, %v292
    %v294 = vsub.s32 4294967266, %v289
    %v295 = vadd.s32 %v294, 127
    %v296 = vshll.u32 %v295, 23
    %v297 = vor.u32 4788187, %v296
    %v298 = vand.u32 2147483647, %v297
    %v300 = vcvt.s32.f32 %v293
    %v301 = vmul.f32 %v300, %v298
    %v302 = vxor.u32 %v301, 2147483648
    %v303 = vsel %vm182, %v302, %v301
    %v304 = vsub.s32 4, %v280
    %v305 = vsel %vm182, %v304, %v280
    %v306 = vsel %vm181, %v22, %v303
    %v307 = vsel %vm181, 0, %v305
    %v308 = vmul.f32 %v306, %v306
    %v309 = vmul.f32 %v308, -0.001358992
    %v310 = vadd.f32 %v309, 0.041655596
    %v311 = vmul.f32 %v308, %v310
    %v312 = vadd.f32 %v311, -0.4999988
    %v313 = vmul.f32 %v308, %v312
    %v314 = vadd.f32 1.0, %v313
    %v315 = vmul.f32 %v306, %v306
    %v316 = vmul.f32 %v315, -0.00019511016
    %v317 = vadd.f32 %v316, 0.008332121
    %v318 = vmul.f32 %v315, %v317
    %v319 = vadd.f32 %v318, -0.16666654
    %v320 = vmul.f32 %v315, %v319
    %v321 = vadd.f32 %v320, 1.0
    %v322 = vmul.f32 %v321, %v306
    %vm323 = vweird.f32 %v22
    %v324 = vadd.s32 %v307, 3
    %v325 = vand.u32 %v324, 3
    %vm326 = vcmp.lt.s32.totalorder %v325, 2
    %vm327 = vcmp.eq.s32.totalorder %v325, 0
    %v328 = vxor.u32 %v322, 2147483648
    %v329 = vsel %vm327, %v314, %v328
    %vm330 = vcmp.eq.s32.totalorder %v325, 2
    %v331 = vxor.u32 %v314, 2147483648
    %v332 = vsel %vm330, %v331, %v322
    %v333 = vsel %vm326, %v329, %v332
    %v334 = vsel %vm323, nan, %v333
    %v335 = vsel %vm25, %v179, %v334
    %vm336 = vcmask 261120
    %337 = vst.msk [vmem:[#allocation2] sm:$0xff] %vm336, %v335
    // Predicated region
    $region10: #{tpu_custom_call.1} parent=1 // pred_check
      _
    $region11: #{tpu_custom_call.1} parent=1 // pred_check_branch
      %339 = sbr.rel (0) target = $region13
    $region12: #{tpu_custom_call.1} parent=1 // pred_region
      %341 = vsyncadd [#allocation3], 0
      %s343 = sshll.u32 [#allocation2], 4
      %s344 = int_to_ptr.vmem [resolvable:$true] %s343
      %s345 = sshll.u32 %s2, 4
      %s346 = int_to_ptr.hbm [resolvable:$true] %s345
      %348 = dma.vmem_to_hbm [thread:$0]  %s344, 128, %s346, [#allocation3]
    $region13: #{tpu_custom_call.1} parent=1 // pred_fallthru
      _
    // Predicated region
    $region14: #{tpu_custom_call.1} parent=1 // pred_check
      _
    $region15: #{tpu_custom_call.1} parent=1 // pred_check_branch
      %350 = sbr.rel (0) target = $region17
    $region16: #{tpu_custom_call.1} parent=1 // pred_region
      %352 = dma.done [#allocation3], 128
    $region17: #{tpu_custom_call.1} parent=1 // pred_fallthru
      _
    %353 = vsyncpa [#allocation3], 1

</llo_original>
